<compile_context>
chip_gen: v7x
topology: tpu7x:2x2x1
jax: 0.10.0
libtpu: 0.0.40
codegen_flags: <defaults>
</compile_context>

<pallas_src>
import jax
import jax.numpy as jnp
from jax.experimental import pallas as pl
from jax.experimental.pallas import tpu as pltpu

LN_EPS = 1e-5

_TM_CANDIDATES = (512, 256, 128, 64, 32, 16, 8)


def _round_up(x, m):
    return ((x + m - 1) // m) * m


def _cdiv(a, b):
    return -(-a // b)


def _vmem_budget_bytes():
    """~75% of this generation's physical VMEM (v5e/v6e: 128 MiB, v7x: 64 MiB)."""
    cap = 64 * 1024 * 1024  # conservative fallback (v7x-sized)
    try:
        cap = int(pltpu.get_tpu_info().vmem_capacity_bytes)
    except Exception:
        pass
    return int(cap * 3 // 4)


# ----------------------------------------------------------------------------- kernels


def _layernorm_bf16(x_f32, gamma, beta):
    """Row-wise LayerNorm + affine in f32, packed to bf16 for the MXU."""
    mean = jnp.mean(x_f32, axis=-1, keepdims=True)
    xc = x_f32 - mean
    var = jnp.mean(xc * xc, axis=-1, keepdims=True)
    h = xc * jax.lax.rsqrt(var + LN_EPS) * gamma + beta
    return h.astype(jnp.bfloat16)


def _silu_f32(y):
    """y * sigmoid(y); exp on the EUP, divide as approximate reciprocal (EUP)."""
    return y * pl.reciprocal(1.0 + jnp.exp(-y), approx=True)


def _mlp_resnet_kernel_resident(x_ref, p_ref, w_ref, o_ref):
    # x_ref: (tm, D); p_ref: (3, D) f32 = [gamma; beta; bias]; w_ref: (D, D) bf16.
    x = x_ref[...].astype(jnp.float32)
    p = p_ref[...]
    h = _layernorm_bf16(x, p[0:1, :], p[1:2, :])
    y = jnp.dot(h, w_ref[...], preferred_element_type=jnp.float32)
    y = y + p[2:3, :]
    y = _silu_f32(y)
    # Residual: re-read x from VMEM after the matmul (keeps vreg live ranges short).
    o_ref[...] = (y + x_ref[...].astype(jnp.float32)).astype(o_ref.dtype)


def _mlp_resnet_kernel_tiled(x_ref, p_ref, w_ref, o_ref, h_scratch):
    # x_ref: (tm, D); p_ref: (3, D) f32; w_ref: (D, tn) bf16; o_ref: (tm, tn);
    # h_scratch: (tm, D) bf16 post-LN activations, carried across the inner j axis.
    j = pl.program_id(1)
    tn = o_ref.shape[-1]

    @pl.when(j == 0)
    def _():
        x = x_ref[...].astype(jnp.float32)
        p = p_ref[...]
        h_scratch[...] = _layernorm_bf16(x, p[0:1, :], p[1:2, :])

    col = pl.multiple_of(j * tn, 128)
    y = jnp.dot(h_scratch[...], w_ref[...], preferred_element_type=jnp.float32)
    p_cols = p_ref[:, pl.ds(col, tn)]        # (3, tn) column slab: [gamma; beta; bias]
    y = y + p_cols[2:3, :]
    y = _silu_f32(y)
    x_res = x_ref[:, pl.ds(col, tn)].astype(jnp.float32)
    o_ref[...] = (y + x_res).astype(o_ref.dtype)


# ----------------------------------------------------------------------------- wrapper


def prepare_mlp_resnet_params(ln_gamma, ln_beta, w, b):
    """One-time parameter prep (call at init, NOT per forward).

    w is in PyTorch nn.Linear layout [D_out, D_in].  Returns:
      params: (3, D) f32 = [gamma; beta; bias]
      w_t:    (D_in, D_out) bf16 (MXU layout)
    """
    w_t = jnp.asarray(w, jnp.float32).T.astype(jnp.bfloat16)
    params = jnp.stack(
        [jnp.asarray(ln_gamma, jnp.float32),
         jnp.asarray(ln_beta, jnp.float32),
         jnp.asarray(b, jnp.float32)], axis=0)
    return params, w_t


def _select_tiles(B, D, in_itemsize, out_itemsize, budget):
    """Shrink-to-fit tile selection.  Returns (tm, tn, tiled)."""
    b_cap = _round_up(B, 8)

    def too_coarse(tm):
        # Keep >=2 row tiles when we pick very large row tiles (v7x has 2 TCs).
        return tm > 256 and _cdiv(B, tm) < 2

    def resident_ws(tm):
        return (2 * tm * D * in_itemsize        # x row tile (double-buffered)
                + 2 * D * D * 2                 # bf16 weight allocation
                + 2 * tm * D * out_itemsize     # output tile (double-buffered)
                + 2 * 8 * D * 4)                # packed params (sublane-padded)

    # Path 1: whole bf16 weight resident (read from HBM exactly once).
    for tm in _TM_CANDIDATES:
        tm = min(tm, b_cap)
        if too_coarse(tm):
            continue
        if resident_ws(tm) <= budget:
            return tm, D, False

    # Path 2: stream (D, tn) weight column blocks; LN cached in a bf16 scratch.
    def tiled_ws(tm, tn):
        return (2 * tm * D * in_itemsize
                + 2 * D * tn * 2
                + 2 * tm * tn * out_itemsize
                + tm * D * 2                    # LN cache scratch
                + 2 * 8 * D * 4)

    tn_candidates = [t for t in (512, 384, 256, 128) if t < D and D % t == 0]
    if not tn_candidates:
        tn_candidates = [D]                     # no 128-multiple divisor; full rows
    for tm in _TM_CANDIDATES:
        tm = min(tm, b_cap)
        if too_coarse(tm):
            continue
        for tn in tn_candidates:
            if tiled_ws(tm, tn) <= budget:
                return tm, tn, tn < D
    # Last resort for extreme D (see TODO at top of file).
    tn = tn_candidates[-1]
    return min(8, b_cap), tn, tn < D


def mlp_resnet_block(x, params, w_t, *, tm=None, tn=None):
    """x: [B, D]; params/w_t from prepare_mlp_resnet_params.  Returns [B, D]."""
    B, D = x.shape
    assert params.shape == (3, D), params.shape
    assert w_t.shape == (D, D), w_t.shape

    in_itemsize = jnp.dtype(x.dtype).itemsize
    out_itemsize = in_itemsize
    budget = _vmem_budget_bytes()

    auto_tm, auto_tn, auto_tiled = _select_tiles(B, D, in_itemsize, out_itemsize, budget)
    if tm is None:
        tm = auto_tm
    tm = max(8, _round_up(min(tm, _round_up(B, 8)), 8))
    if tn is None:
        tn, tiled = auto_tn, auto_tiled
    else:
        tn = min(tn, D)
        tiled = tn < D
    if tiled:
        assert D % tn == 0 and tn % 128 == 0, (D, tn)

    n_row_tiles = _cdiv(B, tm)

    if not tiled:
        working_set = (2 * tm * D * in_itemsize + 2 * D * D * 2
                       + 2 * tm * D * out_itemsize + 2 * 8 * D * 4)
    else:
        working_set = (2 * tm * D * in_itemsize + 2 * D * tn * 2
                       + 2 * tm * tn * out_itemsize + tm * D * 2 + 2 * 8 * D * 4)
    vmem_limit = int(min(max(2 * working_set, 32 * 1024 * 1024), budget))

    weight_bytes = D * D * 2 * (n_row_tiles if tiled else 1)
    cost = pl.CostEstimate(
        flops=2 * B * D * D,
        transcendentals=B * D,
        bytes_accessed=int(B * D * in_itemsize + weight_bytes
                           + params.size * 4 + B * D * out_itemsize),
    )

    if not tiled:
        grid = (n_row_tiles,)
        in_specs = [
            pl.BlockSpec((tm, D), lambda i: (i, 0)),    # x row tile
            pl.BlockSpec((3, D), lambda i: (0, 0)),     # packed gamma/beta/bias
            pl.BlockSpec((D, D), lambda i: (0, 0)),     # resident bf16 weight
        ]
        out_specs = pl.BlockSpec((tm, D), lambda i: (i, 0))
        scratch_shapes = []
        kernel = _mlp_resnet_kernel_resident
        dim_sem = ("parallel",)
    else:
        grid = (n_row_tiles, D // tn)                   # j innermost: LN cache carries
        in_specs = [
            pl.BlockSpec((tm, D), lambda i, j: (i, 0)),   # x row tile (invariant in j)
            pl.BlockSpec((3, D), lambda i, j: (0, 0)),    # packed params
            pl.BlockSpec((D, tn), lambda i, j: (0, j)),   # bf16 weight column block
        ]
        out_specs = pl.BlockSpec((tm, tn), lambda i, j: (i, j))
        scratch_shapes = [pltpu.VMEM((tm, D), jnp.bfloat16)]  # cached post-LN bf16
        kernel = _mlp_resnet_kernel_tiled
        dim_sem = ("parallel", "arbitrary")

    return pl.pallas_call(
        kernel,
        out_shape=jax.ShapeDtypeStruct((B, D), x.dtype),
        grid_spec=pltpu.PrefetchScalarGridSpec(
            num_scalar_prefetch=0,
            grid=grid,
            in_specs=in_specs,
            out_specs=out_specs,
            scratch_shapes=scratch_shapes,
        ),
        compiler_params=pltpu.CompilerParams(
            dimension_semantics=dim_sem,
            vmem_limit_bytes=vmem_limit,
        ),
        cost_estimate=cost,
    )(x, params, w_t)


# ----------------------------------------------------------------------------- reference


def reference(x, ln_gamma, ln_beta, w, b):
    xf = x.astype(jnp.float32)
    mean = jnp.mean(xf, axis=-1, keepdims=True)
    var = jnp.mean((xf - mean) ** 2, axis=-1, keepdims=True)
    xn = (xf - mean) * jax.lax.rsqrt(var + LN_EPS)
    h = xn * ln_gamma + ln_beta
    y = h @ w.T + b
    y = y * jax.nn.sigmoid(y)
    return (y + xf).astype(x.dtype)


if __name__ == "__main__":
    key = jax.random.PRNGKey(0)

    def make_case(k, B, D):
        kx, kw, kb, kg, kbe = jax.random.split(k, 5)
        x = jax.random.normal(kx, (B, D), dtype=jnp.float32)
        ln_gamma = jnp.ones((D,), jnp.float32) + 0.01 * jax.random.normal(kg, (D,))
        ln_beta = 0.01 * jax.random.normal(kbe, (D,))
        bound = 1.0 / (D ** 0.5)
        w = jax.random.uniform(kw, (D, D), minval=-bound, maxval=bound, dtype=jnp.float32)
        b = jax.random.uniform(kb, (D,), minval=-bound, maxval=bound, dtype=jnp.float32)
        return x, ln_gamma, ln_beta, w, b

    k1, k2 = jax.random.split(key)

    # Case 1: small lane-aligned shape -> resident-weight path (single grid axis).
    x, g, bt, w, b = make_case(k1, 16, 128)
    params, w_t = prepare_mlp_resnet_params(g, bt, w, b)
    out = jax.block_until_ready(mlp_resnet_block(x, params, w_t))
    ref = reference(x, g, bt, w, b)
    assert out.shape == x.shape
    assert jnp.allclose(out, ref, atol=5e-2, rtol=5e-2), float(jnp.max(jnp.abs(out - ref)))

    # Case 2: force the column-tiled path (LN-cache scratch, inner "arbitrary" j axis)
    # with a batch that is NOT a multiple of the row tile (edge-block clipping, no pad).
    x, g, bt, w, b = make_case(k2, 24, 256)
    params, w_t = prepare_mlp_resnet_params(g, bt, w, b)
    out = jax.block_until_ready(mlp_resnet_block(x, params, w_t, tm=16, tn=128))
    ref = reference(x, g, bt, w, b)
    assert out.shape == x.shape
    assert jnp.allclose(out, ref, atol=5e-2, rtol=5e-2), float(jnp.max(jnp.abs(out - ref)))

    print("KERNEL_OK")
</pallas_src>

<mosaic_0001>
module attributes {stable_mosaic.version = 11 : i64} {
  func.func @_mlp_resnet_kernel_resident(%arg0: i32, %arg1: memref<16x128xf32, #tpu.memory_space<vmem>>, %arg2: memref<3x128xf32, #tpu.memory_space<vmem>>, %arg3: memref<128x128xbf16, #tpu.memory_space<vmem>>, %arg4: memref<16x128xf32, #tpu.memory_space<vmem>>) attributes {dimension_semantics = [#tpu.dimension_semantics<parallel>], iteration_bounds = array<i64: 1>, scalar_prefetch = 0 : i64, scratch_operands = 0 : i64, tpu.core_type = #tpu.core_type<tc>, window_params = [{transform_indices = @transform_0, window_bounds = array<i64: 16, 128>}, {pipeline_mode = #tpu.pipeline_mode<synchronous>, transform_indices = @transform_1, window_bounds = array<i64: 3, 128>}, {pipeline_mode = #tpu.pipeline_mode<synchronous>, transform_indices = @transform_2, window_bounds = array<i64: 128, 128>}, {transform_indices = @transform_3, window_bounds = array<i64: 16, 128>}]} {
    %c0 = arith.constant 0 : index
    %c0_0 = arith.constant 0 : index
    %0 = vector.load %arg1[%c0, %c0_0] : memref<16x128xf32, #tpu.memory_space<vmem>>, vector<16x128xf32>
    %c0_1 = arith.constant 0 : index
    %c0_2 = arith.constant 0 : index
    %1 = vector.load %arg2[%c0_1, %c0_2] : memref<3x128xf32, #tpu.memory_space<vmem>>, vector<3x128xf32>
    %2 = vector.extract_strided_slice %1 {offsets = [0, 0], sizes = [1, 128], strides = [1, 1]} : vector<3x128xf32> to vector<1x128xf32>
    %3 = vector.extract_strided_slice %1 {offsets = [1, 0], sizes = [1, 128], strides = [1, 1]} : vector<3x128xf32> to vector<1x128xf32>
    %cst = arith.constant dense<0.000000e+00> : vector<16xf32>
    %4 = vector.multi_reduction <add>, %0, %cst [1] : vector<16x128xf32> to vector<16xf32>
    %5 = vector.shape_cast %4 : vector<16xf32> to vector<16x1xf32>
    %cst_3 = arith.constant 1.280000e+02 : f32
    %6 = vector.broadcast %cst_3 : f32 to vector<16x1xf32>
    %7 = arith.divf %5, %6 : vector<16x1xf32>
    %8 = vector.broadcast %7 : vector<16x1xf32> to vector<16x128xf32>
    %9 = arith.subf %0, %8 : vector<16x128xf32>
    %10 = arith.mulf %9, %9 : vector<16x128xf32>
    %cst_4 = arith.constant dense<0.000000e+00> : vector<16xf32>
    %11 = vector.multi_reduction <add>, %10, %cst_4 [1] : vector<16x128xf32> to vector<16xf32>
    %12 = vector.shape_cast %11 : vector<16xf32> to vector<16x1xf32>
    %cst_5 = arith.constant 1.280000e+02 : f32
    %13 = vector.broadcast %cst_5 : f32 to vector<16x1xf32>
    %14 = arith.divf %12, %13 : vector<16x1xf32>
    %cst_6 = arith.constant 9.99999974E-6 : f32
    %15 = vector.broadcast %cst_6 : f32 to vector<16x1xf32>
    %16 = arith.addf %14, %15 : vector<16x1xf32>
    %17 = math.rsqrt %16 : vector<16x1xf32>
    %18 = vector.broadcast %17 : vector<16x1xf32> to vector<16x128xf32>
    %19 = arith.mulf %9, %18 : vector<16x128xf32>
    %20 = vector.broadcast %2 : vector<1x128xf32> to vector<16x128xf32>
    %21 = arith.mulf %19, %20 : vector<16x128xf32>
    %22 = vector.broadcast %3 : vector<1x128xf32> to vector<16x128xf32>
    %23 = arith.addf %21, %22 : vector<16x128xf32>
    %24 = arith.truncf %23 : vector<16x128xf32> to vector<16x128xbf16>
    %c0_7 = arith.constant 0 : index
    %c0_8 = arith.constant 0 : index
    %25 = vector.load %arg3[%c0_7, %c0_8] : memref<128x128xbf16, #tpu.memory_space<vmem>>, vector<128x128xbf16>
    %cst_9 = arith.constant dense<0.000000e+00> : vector<16x128xf32>
    %26 = tpu.matmul %24, %25, %cst_9 {dimension_numbers = #tpu.dot_dimension_numbers<[1], [0], [0], [1], [0, 0, 1, 1], [], []>} : vector<16x128xbf16>, vector<128x128xbf16>, vector<16x128xf32> -> vector<16x128xf32>
    %27 = vector.extract_strided_slice %1 {offsets = [2, 0], sizes = [1, 128], strides = [1, 1]} : vector<3x128xf32> to vector<1x128xf32>
    %28 = vector.broadcast %27 : vector<1x128xf32> to vector<16x128xf32>
    %29 = arith.addf %26, %28 : vector<16x128xf32>
    %cst_10 = arith.constant 0.000000e+00 : f32
    %30 = vector.broadcast %cst_10 : f32 to vector<16x128xf32>
    %31 = arith.subf %30, %29 : vector<16x128xf32>
    %32 = math.exp %31 : vector<16x128xf32>
    %cst_11 = arith.constant 1.000000e+00 : f32
    %33 = vector.broadcast %cst_11 : f32 to vector<16x128xf32>
    %34 = arith.addf %33, %32 : vector<16x128xf32>
    %35 = tpu.reciprocal %34 {approx = true} : vector<16x128xf32> -> vector<16x128xf32>
    %36 = arith.mulf %29, %35 : vector<16x128xf32>
    %c0_12 = arith.constant 0 : index
    %c0_13 = arith.constant 0 : index
    %37 = vector.load %arg1[%c0_12, %c0_13] : memref<16x128xf32, #tpu.memory_space<vmem>>, vector<16x128xf32>
    %38 = arith.addf %36, %37 : vector<16x128xf32>
    %c0_14 = arith.constant 0 : index
    %c0_15 = arith.constant 0 : index
    %39 = vector.load %arg4[%c0_14, %c0_15] : memref<16x128xf32, #tpu.memory_space<vmem>>, vector<16x128xf32>
    tpu.vector_store %arg4[%c0_14, %c0_15], %38 {strides = array<i32>} : memref<16x128xf32, #tpu.memory_space<vmem>>, vector<16x128xf32>,
    return
  }
  func.func @transform_0(%arg0: i32) -> (i32, i32) {
    %c0_i32 = arith.constant 0 : i32
    %c0_i32_0 = arith.constant 0 : i32
    return %arg0, %c0_i32 : i32, i32
  }
  func.func @transform_1(%arg0: i32) -> (i32, i32) {
    %c0_i32 = arith.constant 0 : i32
    %c0_i32_0 = arith.constant 0 : i32
    %c0_i32_1 = arith.constant 0 : i32
    return %c0_i32, %c0_i32_0 : i32, i32
  }
  func.func @transform_2(%arg0: i32) -> (i32, i32) {
    %c0_i32 = arith.constant 0 : i32
    %c0_i32_0 = arith.constant 0 : i32
    %c0_i32_1 = arith.constant 0 : i32
    return %c0_i32, %c0_i32_0 : i32, i32
  }
  func.func @transform_3(%arg0: i32) -> (i32, i32) {
    %c0_i32 = arith.constant 0 : i32
    %c0_i32_0 = arith.constant 0 : i32
    return %arg0, %c0_i32 : i32, i32
  }
}

</mosaic_0001>

<llo_original>
// kernel: tpu_custom_call.1
$region0: #{tpu_custom_call.1}
  #allocation0 [shape = 'u32[]', space=smem, size = 0x4, offset = 0x4, fixed_abs, tag = 'smem constant byte address 0x4 - core index']
  #allocation1 [shape = 'u32[144,128]{1,0:T(1,128)}', space=vmem, size = 0x12000, scoped, tag = 'internal scratch']
  %s0 = inlined_call_operand.hbm [shape: f32[16,128], index: 0, kind: input, shape index: {}]
  %s1 = inlined_call_operand.hbm [shape: f32[3,128], index: 1, kind: input, shape index: {}]
  %s2 = inlined_call_operand.hbm [shape: bf16[128,128], index: 2, kind: input, shape index: {}]
  %s3 = inlined_call_operand.hbm [shape: f32[16,128], index: 3, kind: output, shape index: {}]
  %s4 = sld [smem:[#allocation0]]
  $region34: #{tpu_custom_call.1} parent=0
    _
  %s6 = ssub.s32 1, %s4
  %s7 = scalar_select 0, %s6, %s4
  $region1: #{tpu_custom_call.1} parent=0
    #allocation2 [shape = 'u8[8192]{0}', space=vmem, size = 0x2000, scoped, tag = 'input window, operand 0, single buffered']
    #allocation3 [shape = 's32[1]{0}', space=sflag, size = 0x4, scoped, tag = 'scoped memory for tpu_custom_call.1']
    #allocation4 [shape = 's32[1]{0}', space=sflag, size = 0x4, scoped, tag = 'scoped memory for tpu_custom_call.1']
    #allocation5 [shape = 'u8[2048]{0}', space=vmem, size = 0x800, scoped, tag = 'input window, operand 1, single buffered']
    #allocation6 [shape = 's32[1]{0}', space=sflag, size = 0x4, scoped, tag = 'scoped memory for tpu_custom_call.1']
    #allocation7 [shape = 'u8[32768]{0}', space=vmem, size = 0x8000, scoped, tag = 'input window, operand 2, single buffered']
    #allocation8 [shape = 'u8[8192]{0}', space=vmem, size = 0x2000, scoped, tag = 'output window, operand 0, single buffered']
    %8 = vsyncpa [#allocation3], 0
    %9 = vsyncpa [#allocation6], 0
    %10 = vsyncpa [#allocation4], 0
    // Predicated region
    $region2: #{tpu_custom_call.1} parent=1 // pred_check
      _
    $region3: #{tpu_custom_call.1} parent=1 // pred_check_branch
      %12 = sbr.rel (0) target = $region5
    $region4: #{tpu_custom_call.1} parent=1 // pred_region
      %s14 = ssub.s32 256, 256
      %15 = vsyncadd [#allocation3], %s14
      %s16 = sshll.u32 [#allocation2], 4
      %s17 = int_to_ptr.vmem [resolvable:$true] %s16
      %22 = dma.hbm_to_vmem [thread:$0]  %s0, 256, %s17, [#allocation3], 128, 128, 8
    $region5: #{tpu_custom_call.1} parent=1 // pred_fallthru
      _
    // Predicated region
    $region6: #{tpu_custom_call.1} parent=1 // pred_check
      _
    $region7: #{tpu_custom_call.1} parent=1 // pred_check_branch
      %24 = sbr.rel (0) target = $region9
    $region8: #{tpu_custom_call.1} parent=1 // pred_region
      %s26 = ssub.s32 64, 64
      %27 = vsyncadd [#allocation6], %s26
      %s29 = sshll.u32 [#allocation5], 4
      %s30 = int_to_ptr.vmem [resolvable:$true] %s29
      %32 = dma.hbm_to_vmem [thread:$0]  %s1, 64, %s30, [#allocation6]
    $region9: #{tpu_custom_call.1} parent=1 // pred_fallthru
      _
    // Predicated region
    $region10: #{tpu_custom_call.1} parent=1 // pred_check
      _
    $region11: #{tpu_custom_call.1} parent=1 // pred_check_branch
      %34 = sbr.rel (0) target = $region13
    $region12: #{tpu_custom_call.1} parent=1 // pred_region
      %s36 = ssub.s32 1024, 1024
      %37 = vsyncadd [#allocation6], %s36
      %s38 = sshll.u32 [#allocation7], 4
      %s39 = int_to_ptr.vmem [resolvable:$true] %s38
      %44 = dma.hbm_to_vmem [thread:$0]  %s2, 1024, %s39, [#allocation6], 64, 64, 4
    $region13: #{tpu_custom_call.1} parent=1 // pred_fallthru
      _
    // Predicated region
    $region14: #{tpu_custom_call.1} parent=1 // pred_check
      _
    $region15: #{tpu_custom_call.1} parent=1 // pred_check_branch
      %46 = sbr.rel (0) target = $region17
    $region16: #{tpu_custom_call.1} parent=1 // pred_region
      %47 = dma.done [#allocation3], 256
    $region17: #{tpu_custom_call.1} parent=1 // pred_fallthru
      _
    // Predicated region
    $region18: #{tpu_custom_call.1} parent=1 // pred_check
      _
    $region19: #{tpu_custom_call.1} parent=1 // pred_check_branch
      %49 = sbr.rel (0) target = $region21
    $region20: #{tpu_custom_call.1} parent=1 // pred_region
      %50 = dma.done [#allocation6], 64
    $region21: #{tpu_custom_call.1} parent=1 // pred_fallthru
      _
    // Predicated region
    $region22: #{tpu_custom_call.1} parent=1 // pred_check
      _
    $region23: #{tpu_custom_call.1} parent=1 // pred_check_branch
      %52 = sbr.rel (0) target = $region25
    $region24: #{tpu_custom_call.1} parent=1 // pred_region
      %53 = dma.done [#allocation6], 1024
    $region25: #{tpu_custom_call.1} parent=1 // pred_fallthru
      _
    %v55 = vld [vmem:[#allocation2] sm:$0xff]
    %v56 = vld [vmem:[#allocation2 + $0x8] sm:$0xff]
    %v57 = vld [vmem:[#allocation5] sm:$0x7]
    %58 = vadd.xlane.f32.xlu0 %v55
    %v59 = vpop.xlane.xlu0 %58
    %60 = vadd.xlane.f32.xlu0 %v56
    %v61 = vpop.xlane.xlu0 %60
    %v62 = vrcp.pop 128.0
    %v63 = vmul.f32 %v59, %v62
    %v64 = vmul.f32 %v61, %v62
    %v65 = vsub.f32 %v55, %v63
    %v66 = vsub.f32 %v56, %v64
    %v67 = vmul.f32 %v65, %v65
    %v68 = vmul.f32 %v66, %v66
    %69 = vadd.xlane.f32.xlu0 %v67
    %v70 = vpop.xlane.xlu0 %69
    %71 = vadd.xlane.f32.xlu0 %v68
    %v72 = vpop.xlane.xlu0 %71
    %v73 = vmul.f32 %v70, %v62
    %v74 = vmul.f32 %v72, %v62
    %v75 = vadd.f32 %v73, 1e-05
    %v76 = vadd.f32 %v74, 1e-05
    %v77 = vrsqrt.pop %v75
    %v78 = vrsqrt.pop %v76
    %v79 = vmul.f32 %v65, %v77
    %v80 = vmul.f32 %v66, %v78
    %v81 = vlaneseq
    %v82 = vshrl.u32 %v81, 7
    %v83 = vsub.s32 0, %v82
    %v84 = vrot.slane %v57, %v83
    %v85 = vmul.f32 %v79, %v84
    %v86 = vmul.f32 %v80, %v84
    %v87 = vlaneseq
    %v88 = vshrl.u32 %v87, 7
    %v89 = vsub.s32 1, %v88
    %v90 = vrot.slane %v57, %v89
    %v91 = vadd.f32 %v85, %v90
    %v92 = vadd.f32 %v86, %v90
    %v93 = vpack.c.bf16 %v92, %v91
    %v94 = vld [vmem:[#allocation7] sm:$0xf]
    %v95 = vld [vmem:[#allocation7 + $0x4] sm:$0xf]
    %v96 = vld [vmem:[#allocation7 + $0x8] sm:$0xf]
    %v97 = vld [vmem:[#allocation7 + $0xc] sm:$0xf]
    %v98 = vld [vmem:[#allocation7 + $0x10] sm:$0xf]
    %v99 = vld [vmem:[#allocation7 + $0x14] sm:$0xf]
    %v100 = vld [vmem:[#allocation7 + $0x18] sm:$0xf]
    %v101 = vld [vmem:[#allocation7 + $0x1c] sm:$0xf]
    %v102 = vld [vmem:[#allocation7 + $0x20] sm:$0xf]
    %v103 = vld [vmem:[#allocation7 + $0x24] sm:$0xf]
    %v104 = vld [vmem:[#allocation7 + $0x28] sm:$0xf]
    %v105 = vld [vmem:[#allocation7 + $0x2c] sm:$0xf]
    %v106 = vld [vmem:[#allocation7 + $0x30] sm:$0xf]
    %v107 = vld [vmem:[#allocation7 + $0x34] sm:$0xf]
    %v108 = vld [vmem:[#allocation7 + $0x38] sm:$0xf]
    %v109 = vld [vmem:[#allocation7 + $0x3c] sm:$0xf]
    %v110 = vlaneseq
    %v111 = vshrl.u32 %v110, 7
    %v112 = vsub.s32 2, %v111
    %v113 = vrot.slane %v57, %v112
    %v130 = vunpack.c.l.b16 %v94
    %v131 = vunpack.c.l.b16 %v95
    %v132 = vunpack.c.l.b16 %v96
    %v133 = vunpack.c.l.b16 %v97
    %v134 = vunpack.c.l.b16 %v98
    %v135 = vunpack.c.l.b16 %v99
    %v136 = vunpack.c.l.b16 %v100
    %v137 = vunpack.c.l.b16 %v101
    %v138 = vunpack.c.l.b16 %v102
    %v139 = vunpack.c.l.b16 %v103
    %v140 = vunpack.c.l.b16 %v104
    %v141 = vunpack.c.l.b16 %v105
    %v142 = vunpack.c.l.b16 %v106
    %v143 = vunpack.c.l.b16 %v107
    %v144 = vunpack.c.l.b16 %v108
    %v145 = vunpack.c.l.b16 %v109
    %v146 = vpack.c.b16 %v131, %v130
    %v147 = vpack.c.b16 %v133, %v132
    %v148 = vpack.c.b16 %v135, %v134
    %v149 = vpack.c.b16 %v137, %v136
    %v150 = vpack.c.b16 %v139, %v138
    %v151 = vpack.c.b16 %v141, %v140
    %v152 = vpack.c.b16 %v143, %v142
    %v153 = vpack.c.b16 %v145, %v144
    %162 = vmatprep.subr.bf16.mxu0 0
    %163 = vmatpush1.bf16.msra.mxu0 %v146
    %164 = vmatprep.subr.bf16.mxu0 0
    %165 = vmatpush1.bf16.msra.mxu0 %v147
    %166 = vmatprep.subr.bf16.mxu0 0
    %167 = vmatpush1.bf16.msra.mxu0 %v148
    %168 = vmatprep.subr.bf16.mxu0 0
    %169 = vmatpush1.bf16.msra.mxu0 %v149
    %170 = vmatprep.subr.bf16.mxu0 0
    %171 = vmatpush1.bf16.msra.mxu0 %v150
    %172 = vmatprep.subr.bf16.mxu0 0
    %173 = vmatpush1.bf16.msra.mxu0 %v151
    %174 = vmatprep.subr.bf16.mxu0 0
    %175 = vmatpush1.bf16.msra.mxu0 %v152
    %176 = vmatprep.subr.bf16.mxu0 0
    %177 = vmatpush1.bf16.msra.mxu0 %v153
    %178 = vmatprep.subr.bf16.mxu0 0
    %179 = vmatpush1.bf16.msra.mxu0 0
    %180 = vmatprep.subr.bf16.mxu0 0
    %181 = vmatpush1.bf16.msra.mxu0 0
    %182 = vmatprep.subr.bf16.mxu0 0
    %183 = vmatpush1.bf16.msra.mxu0 0
    %184 = vmatprep.subr.bf16.mxu0 0
    %185 = vmatpush1.bf16.msra.mxu0 0
    %186 = vmatprep.subr.bf16.mxu0 0
    %187 = vmatpush1.bf16.msra.mxu0 0
    %188 = vmatprep.subr.bf16.mxu0 0
    %189 = vmatpush1.bf16.msra.mxu0 0
    %190 = vmatprep.subr.bf16.mxu0 0
    %191 = vmatpush1.bf16.msra.mxu0 0
    %192 = vmatprep.subr.bf16.mxu0 0
    %193 = vmatpush1.bf16.msra.mxu0 0
    %194 = vmatprep.mubr.bf16.mxu0 0
    %195 = vmatmul.mubr.bf16.gmra.mrb[0].mxu0 %v93
    %v196 = vpop.f32.mrb[0].mxu0
    %v197 = vadd.f32 %v113, %v196
    %v198 = vpop.f32.mrb[0].mxu0
    %v199 = vpop.f32.mrb[0].mxu0
    %v200 = vadd.f32 %v113, %v199
    %v201 = vpop.f32.mrb[0].mxu0
    %202 = vdwg.mxu0
    %v203 = vsub.f32 0.0, %v197
    %v204 = vsub.f32 0.0, %v200
    %v205 = vmul.f32 %v203, 1.442695
    %v206 = vpow.pop %v205
    %v207 = vmul.f32 %v204, 1.442695
    %v208 = vpow.pop %v207
    %v209 = vadd.f32 %v206, 1.0
    %v210 = vadd.f32 %v208, 1.0
    %v211 = vrcp.pop %v209
    %v212 = vrcp.pop %v210
    %v213 = vmul.f32 %v197, %v211
    %v214 = vmul.f32 %v200, %v212
    %v215 = vadd.f32 %v213, %v55
    %v216 = vadd.f32 %v214, %v56
    %217 = vst [vmem:[#allocation8] sm:$0xff] %v215
    %218 = vst [vmem:[#allocation8 + $0x8] sm:$0xff] %v216
    // Predicated region
    $region26: #{tpu_custom_call.1} parent=1 // pred_check
      _
    $region27: #{tpu_custom_call.1} parent=1 // pred_check_branch
      %220 = sbr.rel (0) target = $region29
    $region28: #{tpu_custom_call.1} parent=1 // pred_region
      %s222 = ssub.s32 256, 256
      %223 = vsyncadd [#allocation4], %s222
      %s224 = sshll.u32 [#allocation8], 4
      %s225 = int_to_ptr.vmem [resolvable:$true] %s224
      %230 = dma.vmem_to_hbm [thread:$0]  %s225, 256, %s3, [#allocation4], 128, 128, 8
    $region29: #{tpu_custom_call.1} parent=1 // pred_fallthru
      _
    // Predicated region
    $region30: #{tpu_custom_call.1} parent=1 // pred_check
      _
    $region31: #{tpu_custom_call.1} parent=1 // pred_check_branch
      %232 = sbr.rel (0) target = $region33
    $region32: #{tpu_custom_call.1} parent=1 // pred_region
      %233 = dma.done [#allocation4], 256
    $region33: #{tpu_custom_call.1} parent=1 // pred_fallthru
      _
    %234 = vsyncpa [#allocation3], 1
    %235 = vsyncpa [#allocation6], 1
    %236 = vsyncpa [#allocation4], 1

</llo_original>
